<compile_context>
chip_gen: v7x
topology: tpu7x:2x2x1
jax: 0.10.0
libtpu: 0.0.40
codegen_flags: <defaults>
</compile_context>

<pallas_src>
from functools import partial

import jax
import jax.numpy as jnp
from jax.experimental import pallas as pl
from jax.experimental.pallas import tpu as pltpu

_LANES = 128
_SUBLANES = 8
# 1024 rows * 128 lanes * 4 B = 512 KiB per input buffer; with double
# buffering and <=3 inputs this stays far under v7x's 64 MiB VMEM.
_MAX_TILE_ROWS = 1024


# ----------------------------- Pallas kernels ------------------------------
def _focal_partial_kernel(alpha, gamma, x_ref, tcode_ref, out_ref):
    """Per-tile focal BCE-with-logits partial sums.

    x_ref     : (TILE_ROWS, 128) logits (cast to f32 in-kernel).
    tcode_ref : (TILE_ROWS, 128) int32 codes: 1 = target class,
                0 = valid non-target class, -1 = background column / padding.
    out_ref   : (1, 8, 128) f32 in-lane partial sums for this tile.
    """
    x = x_ref[...].astype(jnp.float32)
    tc = tcode_ref[...]
    t = tc == 1
    use = (tc >= 0).astype(jnp.float32)

    # One shared transcendental: e = exp(-|x|) feeds sigmoid and the BCE log.
    e = jnp.exp(-jnp.abs(x))
    r = pl.reciprocal(1.0 + e, approx=True)
    p = jnp.where(x >= 0.0, r, e * r)            # sigmoid(x)
    omp = jnp.where(t, 1.0 - p, p)               # 1 - pt

    g = float(gamma)
    if g == round(g) and 0 <= int(round(g)) <= 4:
        w = jnp.ones_like(omp)                   # (1-pt)**gamma, integer gamma:
        for _ in range(int(round(g))):           # pure VALU multiplies, no EUP.
            w = w * omp
    else:                                        # non-integer gamma fallback
        w = jnp.where(omp > 0.0,
                      jnp.exp(g * jnp.log(jnp.maximum(omp, 1e-30))), 0.0)
    w = jnp.where(t, alpha * w, (1.0 - alpha) * w) * use

    tf = t.astype(jnp.float32)
    bce = jnp.maximum(x, 0.0) - x * tf + jnp.log(1.0 + e)  # stable BCE w/ logits
    contrib = w * bce

    rows = contrib.shape[0]
    out_ref[0] = jnp.sum(
        contrib.reshape(rows // _SUBLANES, _SUBLANES, _LANES), axis=0)


def _smoothl1_partial_kernel(lp_ref, lt_ref, mask_ref, out_ref):
    """Per-tile positive-masked smooth-L1 (beta=1) partial sums."""
    d = lp_ref[...].astype(jnp.float32) - lt_ref[...].astype(jnp.float32)
    m = mask_ref[...].astype(jnp.float32)
    ad = jnp.abs(d)
    sl1 = jnp.where(ad < 1.0, 0.5 * d * d, ad - 0.5)
    contrib = sl1 * m
    rows = contrib.shape[0]
    out_ref[0] = jnp.sum(
        contrib.reshape(rows // _SUBLANES, _SUBLANES, _LANES), axis=0)


# --------------------------- tiling / packing glue --------------------------
def _tiling(n_elems):
    rows = pl.cdiv(n_elems, _LANES)
    rows = pl.cdiv(rows, _SUBLANES) * _SUBLANES
    tile_rows = min(_MAX_TILE_ROWS, rows)
    num_tiles = pl.cdiv(rows, tile_rows)
    return tile_rows, num_tiles, num_tiles * tile_rows


def _pack_lane_dense(flat, padded_rows, pad_value):
    n = flat.shape[0]
    flat = jnp.pad(flat, (0, padded_rows * _LANES - n),
                   constant_values=pad_value)
    return flat.reshape(padded_rows, _LANES)


def _tiled_partial_sum(kernel, inputs, tile_rows, num_tiles, *,
                       transcendentals_per_elem, flops_per_elem):
    n_elems = num_tiles * tile_rows * _LANES
    bytes_in = sum(int(x.size) * x.dtype.itemsize for x in inputs)
    partials = pl.pallas_call(
        kernel,
        out_shape=jax.ShapeDtypeStruct((num_tiles, _SUBLANES, _LANES),
                                       jnp.float32),
        grid_spec=pltpu.PrefetchScalarGridSpec(
            num_scalar_prefetch=0,
            grid=(num_tiles,),
            in_specs=[pl.BlockSpec((tile_rows, _LANES), lambda i: (i, 0))
                      for _ in inputs],
            out_specs=pl.BlockSpec((1, _SUBLANES, _LANES),
                                   lambda i: (i, 0, 0)),
        ),
        compiler_params=pltpu.CompilerParams(
            dimension_semantics=("parallel",),
            vmem_limit_bytes=32 * 1024 * 1024),
        cost_estimate=pl.CostEstimate(
            flops=flops_per_elem * n_elems,
            transcendentals=transcendentals_per_elem * n_elems,
            bytes_accessed=bytes_in + num_tiles * _SUBLANES * _LANES * 4),
    )(*inputs)
    return jnp.sum(partials)      # tiny cross-lane/cross-tile reduce in XLA


# ------------------------- plain-JAX glue: matching ------------------------
def _cxcywh_to_xyxy(b):
    return jnp.concatenate([b[..., :2] - b[..., 2:] * 0.5,
                            b[..., :2] + b[..., 2:] * 0.5], axis=-1)


def _iou(gt, anchors):
    lt = jnp.maximum(gt[:, None, :2], anchors[None, :, :2])
    rb = jnp.minimum(gt[:, None, 2:], anchors[None, :, 2:])
    wh = jnp.clip(rb - lt, 0.0, None)
    inter = wh[..., 0] * wh[..., 1]
    area_g = (gt[:, 2] - gt[:, 0]) * (gt[:, 3] - gt[:, 1])
    area_a = (anchors[:, 2] - anchors[:, 0]) * (anchors[:, 3] - anchors[:, 1])
    return inter / (area_g[:, None] + area_a[None, :] - inter)


def _match_one(cls_t, gt_xyxy, anchors_cxcywh, threshold, variances):
    # TODO(synk): `match` / `one_hot_embedding` / `to_var` are external helpers
    # in the original repo; this is the canonical SSD matching + variance encode.
    G = gt_xyxy.shape[0]
    anchors_xyxy = _cxcywh_to_xyxy(anchors_cxcywh)
    ious = _iou(gt_xyxy, anchors_xyxy)                     # (G, A)
    best_gt_iou = jnp.max(ious, axis=0)                    # per anchor
    best_gt_idx = jnp.argmax(ious, axis=0)
    best_anchor_idx = jnp.argmax(ious, axis=1)             # per gt box
    best_gt_iou = best_gt_iou.at[best_anchor_idx].set(2.0)
    best_gt_idx = best_gt_idx.at[best_anchor_idx].set(jnp.arange(G))
    matched = gt_xyxy[best_gt_idx]                         # (A, 4)
    cls = jnp.where(best_gt_iou < threshold, 0, cls_t[best_gt_idx])

    m_cxcy = (matched[:, :2] + matched[:, 2:]) * 0.5
    m_wh = matched[:, 2:] - matched[:, :2]
    a_cxcy = anchors_cxcywh[:, :2]
    a_wh = anchors_cxcywh[:, 2:]
    g_cxcy = (m_cxcy - a_cxcy) / (variances[0] * a_wh)
    g_wh = jnp.log(m_wh / a_wh) / variances[1]
    loc = jnp.concatenate([g_cxcy, g_wh], axis=1)
    return cls.astype(jnp.float32), loc


# ------------------------------- module -----------------------------------
class FocalLossJax:
    def __init__(self, class_count, threshold, alpha, gamma):
        self.class_count = class_count
        self.threshold = threshold
        self.alpha = alpha
        self.gamma = gamma
        self.variance = (0.1, 0.2)

    def __call__(self, class_preds, class_targets, loc_preds, loc_targets, anchors):
        C = self.class_count
        # per-image anchor matching (glue, plain JAX)
        match_fn = lambda ct, lt: _match_one(ct, lt, anchors,
                                             self.threshold, self.variance)
        class_m, loc_m = jax.vmap(match_fn)(class_targets, loc_targets)

        labels = class_m.reshape(-1).astype(jnp.int32)      # (N,) matched labels
        n_anchors = labels.shape[0]

        # ---- classification: lane-dense logits + per-element target codes
        cls_ids = jnp.arange(C, dtype=jnp.int32)[None, :]
        tcode = jnp.where(cls_ids >= 1,
                          (cls_ids == labels[:, None]).astype(jnp.int32),
                          -1)                               # drop background col
        tile_c, ntiles_c, rows_c = _tiling(n_anchors * C)
        cp_p = _pack_lane_dense(class_preds.reshape(-1), rows_c, 0)   # keep dtype
        tc_p = _pack_lane_dense(tcode.reshape(-1), rows_c, -1)
        cls_sum = _tiled_partial_sum(
            partial(_focal_partial_kernel, float(self.alpha), float(self.gamma)),
            (cp_p, tc_p), tile_c, ntiles_c,
            transcendentals_per_elem=3, flops_per_elem=25)

        # ---- localization: lane-dense smooth-L1 over positive anchors
        pos = labels > 0
        num_matched = jnp.sum(pos.astype(jnp.float32))
        tile_l, ntiles_l, rows_l = _tiling(n_anchors * 4)
        lp_p = _pack_lane_dense(loc_preds.reshape(-1), rows_l, 0)
        lt_p = _pack_lane_dense(loc_m.reshape(-1).astype(loc_preds.dtype),
                                rows_l, 0)
        pm_p = _pack_lane_dense(jnp.repeat(pos, 4).astype(loc_preds.dtype),
                                rows_l, 0)
        loc_sum = _tiled_partial_sum(
            _smoothl1_partial_kernel, (lp_p, lt_p, pm_p), tile_l, ntiles_l,
            transcendentals_per_elem=0, flops_per_elem=8)

        # SSD matching forces >=1 positive anchor per GT box, so num_matched > 0
        # whenever GT boxes exist (same division semantics as the reference).
        class_loss = cls_sum / num_matched
        loc_loss = loc_sum / num_matched
        return class_loss, loc_loss, class_loss + loc_loss


# --------------------------------- main ------------------------------------
if __name__ == "__main__":
    key = jax.random.PRNGKey(0)
    b, num_anchors, class_count, num_gt = 2, 16, 4, 3
    k1, k2, k3, k4 = jax.random.split(key, 4)

    class_preds = jax.random.normal(k1, (b, num_anchors, class_count), jnp.float32)
    loc_preds = 0.1 * jax.random.normal(k2, (b, num_anchors, 4), jnp.float32)

    # deterministic 4x4 grid of anchors in (cx, cy, w, h), normalized coords
    g = (jnp.arange(4, dtype=jnp.float32) + 0.5) / 4.0
    cx, cy = jnp.meshgrid(g, g)
    anchors = jnp.stack([cx.ravel(), cy.ravel(),
                         jnp.full((16,), 0.25, jnp.float32),
                         jnp.full((16,), 0.25, jnp.float32)], axis=1)

    # ground-truth boxes (xyxy in [0,1]) and labels in 1..class_count-1
    centers = jax.random.uniform(k3, (b, num_gt, 2), minval=0.2, maxval=0.8)
    sizes = jax.random.uniform(k4, (b, num_gt, 2), minval=0.1, maxval=0.3)
    loc_targets = jnp.concatenate([centers - sizes / 2, centers + sizes / 2], axis=-1)
    class_targets = jax.random.randint(jax.random.PRNGKey(1), (b, num_gt),
                                       1, class_count).astype(jnp.int32)

    loss_mod = FocalLossJax(class_count=class_count, threshold=0.5,
                            alpha=0.25, gamma=2.0)
    class_loss, loc_loss, loss = loss_mod(class_preds, class_targets,
                                          loc_preds, loc_targets, anchors)
    jax.block_until_ready((class_loss, loc_loss, loss))
    print("KERNEL_OK")
</pallas_src>

<mosaic_0001>
module attributes {stable_mosaic.version = 11 : i64} {
  func.func @_focal_partial_kernel(%arg0: i32, %arg1: memref<8x128xf32, #tpu.memory_space<vmem>>, %arg2: memref<8x128xi32, #tpu.memory_space<vmem>>, %arg3: memref<1x8x128xf32, #tpu.memory_space<vmem>>) attributes {dimension_semantics = [#tpu.dimension_semantics<parallel>], iteration_bounds = array<i64: 1>, scalar_prefetch = 0 : i64, scratch_operands = 0 : i64, tpu.core_type = #tpu.core_type<tc>, window_params = [{transform_indices = @transform_0, window_bounds = array<i64: 8, 128>}, {transform_indices = @transform_1, window_bounds = array<i64: 8, 128>}, {transform_indices = @transform_2, window_bounds = array<i64: 1, 8, 128>}]} {
    %c0 = arith.constant 0 : index
    %c0_0 = arith.constant 0 : index
    %0 = vector.load %arg1[%c0, %c0_0] : memref<8x128xf32, #tpu.memory_space<vmem>>, vector<8x128xf32>
    %c0_1 = arith.constant 0 : index
    %c0_2 = arith.constant 0 : index
    %1 = vector.load %arg2[%c0_1, %c0_2] : memref<8x128xi32, #tpu.memory_space<vmem>>, vector<8x128xi32>
    %c1_i32 = arith.constant 1 : i32
    %2 = vector.broadcast %c1_i32 : i32 to vector<8x128xi32>
    %3 = arith.cmpi eq, %1, %2 : vector<8x128xi32>
    %c0_i32 = arith.constant 0 : i32
    %4 = vector.broadcast %c0_i32 : i32 to vector<8x128xi32>
    %5 = arith.cmpi sge, %1, %4 : vector<8x128xi32>
    %6 = arith.extui %5 : vector<8x128xi1> to vector<8x128xi32>
    %7 = arith.sitofp %6 : vector<8x128xi32> to vector<8x128xf32>
    %8 = math.absf %0 : vector<8x128xf32>
    %cst = arith.constant 0.000000e+00 : f32
    %9 = vector.broadcast %cst : f32 to vector<8x128xf32>
    %10 = arith.subf %9, %8 : vector<8x128xf32>
    %11 = math.exp %10 : vector<8x128xf32>
    %cst_3 = arith.constant 1.000000e+00 : f32
    %12 = vector.broadcast %cst_3 : f32 to vector<8x128xf32>
    %13 = arith.addf %12, %11 : vector<8x128xf32>
    %14 = tpu.reciprocal %13 {approx = true} : vector<8x128xf32> -> vector<8x128xf32>
    %cst_4 = arith.constant 0.000000e+00 : f32
    %15 = vector.broadcast %cst_4 : f32 to vector<8x128xf32>
    %16 = arith.cmpf oge, %0, %15 : vector<8x128xf32>
    %17 = arith.mulf %11, %14 : vector<8x128xf32>
    %18 = arith.select %16, %14, %17 : vector<8x128xi1>, vector<8x128xf32>
    %cst_5 = arith.constant 1.000000e+00 : f32
    %19 = vector.broadcast %cst_5 : f32 to vector<8x128xf32>
    %20 = arith.subf %19, %18 : vector<8x128xf32>
    %21 = arith.select %3, %20, %18 : vector<8x128xi1>, vector<8x128xf32>
    %cst_6 = arith.constant 1.000000e+00 : f32
    %22 = vector.broadcast %cst_6 : f32 to vector<8x128xf32>
    %23 = arith.mulf %22, %21 : vector<8x128xf32>
    %24 = arith.mulf %23, %21 : vector<8x128xf32>
    %cst_7 = arith.constant 2.500000e-01 : f32
    %25 = vector.broadcast %cst_7 : f32 to vector<8x128xf32>
    %26 = arith.mulf %25, %24 : vector<8x128xf32>
    %cst_8 = arith.constant 7.500000e-01 : f32
    %27 = vector.broadcast %cst_8 : f32 to vector<8x128xf32>
    %28 = arith.mulf %27, %24 : vector<8x128xf32>
    %29 = arith.select %3, %26, %28 : vector<8x128xi1>, vector<8x128xf32>
    %30 = arith.mulf %29, %7 : vector<8x128xf32>
    %31 = arith.extui %3 : vector<8x128xi1> to vector<8x128xi32>
    %32 = arith.sitofp %31 : vector<8x128xi32> to vector<8x128xf32>
    %cst_9 = arith.constant 0.000000e+00 : f32
    %33 = vector.broadcast %cst_9 : f32 to vector<8x128xf32>
    %34 = arith.maximumf %0, %33 : vector<8x128xf32>
    %35 = arith.mulf %0, %32 : vector<8x128xf32>
    %36 = arith.subf %34, %35 : vector<8x128xf32>
    %cst_10 = arith.constant 1.000000e+00 : f32
    %37 = vector.broadcast %cst_10 : f32 to vector<8x128xf32>
    %38 = arith.addf %37, %11 : vector<8x128xf32>
    %39 = math.log %38 : vector<8x128xf32>
    %40 = arith.addf %36, %39 : vector<8x128xf32>
    %41 = arith.mulf %30, %40 : vector<8x128xf32>
    %42 = vector.shape_cast %41 : vector<8x128xf32> to vector<1x8x128xf32>
    %cst_11 = arith.constant dense<0.000000e+00> : vector<8x128xf32>
    %43 = vector.multi_reduction <add>, %42, %cst_11 [0] : vector<1x8x128xf32> to vector<8x128xf32>
    %c0_12 = arith.constant 0 : index
    %c0_13 = arith.constant 0 : index
    %c0_14 = arith.constant 0 : index
    %44 = vector.load %arg3[%c0_12, %c0_13, %c0_14] : memref<1x8x128xf32, #tpu.memory_space<vmem>>, vector<1x8x128xf32>
    %45 = vector.shape_cast %44 : vector<1x8x128xf32> to vector<8x128xf32>
    %46 = vector.shape_cast %43 : vector<8x128xf32> to vector<1x8x128xf32>
    tpu.vector_store %arg3[%c0_12, %c0_13, %c0_14], %46 {strides = array<i32>} : memref<1x8x128xf32, #tpu.memory_space<vmem>>, vector<1x8x128xf32>,
    return
  }
  func.func @transform_0(%arg0: i32) -> (i32, i32) {
    %c0_i32 = arith.constant 0 : i32
    %c0_i32_0 = arith.constant 0 : i32
    return %arg0, %c0_i32 : i32, i32
  }
  func.func @transform_1(%arg0: i32) -> (i32, i32) {
    %c0_i32 = arith.constant 0 : i32
    %c0_i32_0 = arith.constant 0 : i32
    return %arg0, %c0_i32 : i32, i32
  }
  func.func @transform_2(%arg0: i32) -> (i32, i32, i32) {
    %c0_i32 = arith.constant 0 : i32
    %c0_i32_0 = arith.constant 0 : i32
    %c0_i32_1 = arith.constant 0 : i32
    return %arg0, %c0_i32, %c0_i32_0 : i32, i32, i32
  }
}

</mosaic_0001>

<llo_original>
// kernel: tpu_custom_call.1
$region0: #{tpu_custom_call.1}
  #allocation0 [shape = 'u32[]', space=smem, size = 0x4, offset = 0x4, fixed_abs, tag = 'smem constant byte address 0x4 - core index']
  #allocation1 [shape = 'u32[144,128]{1,0:T(1,128)}', space=vmem, size = 0x12000, scoped, tag = 'internal scratch']
  %s0 = inlined_call_operand.hbm [shape: f32[8,128], index: 0, kind: input, shape index: {}]
  %s1 = inlined_call_operand.hbm [shape: s32[8,128], index: 1, kind: input, shape index: {}]
  %s2 = inlined_call_operand.hbm [shape: f32[1,8,128], index: 2, kind: output, shape index: {}]
  %s3 = sld [smem:[#allocation0]]
  $region26: #{tpu_custom_call.1} parent=0
    _
  %s5 = ssub.s32 1, %s3
  %s6 = scalar_select 0, %s5, %s3
  $region1: #{tpu_custom_call.1} parent=0
    #allocation2 [shape = 'u8[4096]{0}', space=vmem, size = 0x1000, scoped, tag = 'input window, operand 0, single buffered']
    #allocation3 [shape = 's32[1]{0}', space=sflag, size = 0x4, scoped, tag = 'scoped memory for tpu_custom_call.1']
    #allocation4 [shape = 's32[1]{0}', space=sflag, size = 0x4, scoped, tag = 'scoped memory for tpu_custom_call.1']
    #allocation5 [shape = 'u8[4096]{0}', space=vmem, size = 0x1000, scoped, tag = 'input window, operand 1, single buffered']
    #allocation6 [shape = 's32[1]{0}', space=sflag, size = 0x4, scoped, tag = 'scoped memory for tpu_custom_call.1']
    #allocation7 [shape = 'u8[4096]{0}', space=vmem, size = 0x1000, scoped, tag = 'output window, operand 0, single buffered']
    %7 = vsyncpa [#allocation3], 0
    %8 = vsyncpa [#allocation6], 0
    %9 = vsyncpa [#allocation4], 0
    // Predicated region
    $region2: #{tpu_custom_call.1} parent=1 // pred_check
      _
    $region3: #{tpu_custom_call.1} parent=1 // pred_check_branch
      %11 = sbr.rel (0) target = $region5
    $region4: #{tpu_custom_call.1} parent=1 // pred_region
      %s13 = ssub.s32 128, 128
      %14 = vsyncadd [#allocation3], %s13
      %s16 = sshll.u32 [#allocation2], 4
      %s17 = int_to_ptr.vmem [resolvable:$true] %s16
      %19 = dma.hbm_to_vmem [thread:$0]  %s0, 128, %s17, [#allocation3]
    $region5: #{tpu_custom_call.1} parent=1 // pred_fallthru
      _
    // Predicated region
    $region6: #{tpu_custom_call.1} parent=1 // pred_check
      _
    $region7: #{tpu_custom_call.1} parent=1 // pred_check_branch
      %21 = sbr.rel (0) target = $region9
    $region8: #{tpu_custom_call.1} parent=1 // pred_region
      %s23 = ssub.s32 128, 128
      %24 = vsyncadd [#allocation6], %s23
      %s26 = sshll.u32 [#allocation5], 4
      %s27 = int_to_ptr.vmem [resolvable:$true] %s26
      %29 = dma.hbm_to_vmem [thread:$0]  %s1, 128, %s27, [#allocation6]
    $region9: #{tpu_custom_call.1} parent=1 // pred_fallthru
      _
    // Predicated region
    $region10: #{tpu_custom_call.1} parent=1 // pred_check
      _
    $region11: #{tpu_custom_call.1} parent=1 // pred_check_branch
      %31 = sbr.rel (0) target = $region13
    $region12: #{tpu_custom_call.1} parent=1 // pred_region
      %32 = dma.done [#allocation3], 128
    $region13: #{tpu_custom_call.1} parent=1 // pred_fallthru
      _
    // Predicated region
    $region14: #{tpu_custom_call.1} parent=1 // pred_check
      _
    $region15: #{tpu_custom_call.1} parent=1 // pred_check_branch
      %34 = sbr.rel (0) target = $region17
    $region16: #{tpu_custom_call.1} parent=1 // pred_region
      %35 = dma.done [#allocation6], 128
    $region17: #{tpu_custom_call.1} parent=1 // pred_fallthru
      _
    %v36 = vld [vmem:[#allocation2] sm:$0xff]
    %v37 = vld [vmem:[#allocation5] sm:$0xff]
    %vm38 = vcmp.eq.s32.totalorder %v37, 1
    %vm39 = vcmp.ge.s32.totalorder %v37, 0
    %v40 = vsel %vm39, 1, 0
    %v41 = vcvt.s32.f32 %v40
    %v42 = vand.u32 2147483647, %v36
    %v43 = vsub.f32 0.0, %v42
    %v44 = vmul.f32 %v43, 1.442695
    %v45 = vpow.pop %v44
    %v46 = vadd.f32 %v45, 1.0
    %v47 = vrcp.pop %v46
    %vm48 = vcmp.ge.f32.partialorder %v36, 0.0
    %v49 = vmul.f32 %v45, %v47
    %v50 = vsel %vm48, %v47, %v49
    %v51 = vsub.f32 1.0, %v50
    %v52 = vsel %vm38, %v51, %v50
    %v53 = vmul.f32 %v52, %v52
    %v54 = vmul.f32 %v53, 0.25
    %v55 = vmul.f32 %v53, 0.75
    %v56 = vsel %vm38, %v54, %v55
    %v57 = vmul.f32 %v56, %v41
    %v58 = vsel %vm38, 1, 0
    %v59 = vcvt.s32.f32 %v58
    %v60 = vmax.f32 %v36, 0.0
    %v61 = vmul.f32 %v36, %v59
    %v62 = vsub.f32 %v60, %v61
    %v63 = vlog2.pop %v46
    %v64 = vmul.f32 %v63, 0.6931472
    %v65 = vadd.f32 %v62, %v64
    %v66 = vmul.f32 %v57, %v65
    %v67 = vadd.f32 %v66, 0.0
    %68 = vst [vmem:[#allocation7] sm:$0xff] %v67
    // Predicated region
    $region18: #{tpu_custom_call.1} parent=1 // pred_check
      _
    $region19: #{tpu_custom_call.1} parent=1 // pred_check_branch
      %70 = sbr.rel (0) target = $region21
    $region20: #{tpu_custom_call.1} parent=1 // pred_region
      %s72 = ssub.s32 128, 128
      %73 = vsyncadd [#allocation4], %s72
      %s75 = sshll.u32 [#allocation7], 4
      %s76 = int_to_ptr.vmem [resolvable:$true] %s75
      %78 = dma.vmem_to_hbm [thread:$0]  %s76, 128, %s2, [#allocation4]
    $region21: #{tpu_custom_call.1} parent=1 // pred_fallthru
      _
    // Predicated region
    $region22: #{tpu_custom_call.1} parent=1 // pred_check
      _
    $region23: #{tpu_custom_call.1} parent=1 // pred_check_branch
      %80 = sbr.rel (0) target = $region25
    $region24: #{tpu_custom_call.1} parent=1 // pred_region
      %81 = dma.done [#allocation4], 128
    $region25: #{tpu_custom_call.1} parent=1 // pred_fallthru
      _
    %82 = vsyncpa [#allocation3], 1
    %83 = vsyncpa [#allocation6], 1
    %84 = vsyncpa [#allocation4], 1

</llo_original>
